<compile_context>
chip_gen: v6e
topology: v6e:2x2x1
jax: 0.10.0
libtpu: 0.0.40
codegen_flags: <defaults>
</compile_context>

<pallas_src>
import functools

import jax
import jax.numpy as jnp
from jax import lax
from jax.experimental import pallas as pl
from jax.experimental.pallas import tpu as pltpu

# ---------------- small synthetic config (consistent with BertCRF.__init__) -------------
HIDDEN = 768          # fixed by nn.Linear(768, num_tags)
NUM_HEADS = 12
HEAD_DIM = HIDDEN // NUM_HEADS
NUM_LAYERS = 2        # small synthetic BERT encoder (real BERT-base: 12)
INTERMEDIATE = 1024   # small FFN (real BERT-base: 3072)
VOCAB = 128
MAX_POS = 64
NUM_TAGS = 9
NUM_TAGS_PAD = 128    # lane-dense classifier output width (zero-padded)
LN_EPS = 1e-12


def _pick_tile(m, max_tile=512):
    """Largest row tile <= max_tile that divides m (multiple of 8), else full m."""
    if m <= max_tile:
        return m
    for t in range(max_tile, 0, -8):
        if m % t == 0:
            return t
    return m


# =========================== Linear (matmul + bias [+ gelu]) kernel =====================
def _linear_kernel(x_ref, w_ref, b_ref, o_ref, *, activation):
    x = x_ref[...].astype(jnp.bfloat16)
    w = w_ref[...].astype(jnp.bfloat16)
    y = jnp.dot(x, w, preferred_element_type=jnp.float32) + b_ref[...].astype(jnp.float32)
    if activation == "gelu":
        # TODO(synk): tanh-approx GELU (HF BERT default is erf-GELU; numerically very close)
        y = 0.5 * y * (1.0 + jnp.tanh(0.7978845608028654 * (y + 0.044715 * y * y * y)))
    o_ref[...] = y.astype(o_ref.dtype)


def pallas_linear(x, w, b, activation=None, tm_max=512):
    M, K = x.shape
    _, N = w.shape
    tm = _pick_tile(M, tm_max)
    return pl.pallas_call(
        functools.partial(_linear_kernel, activation=activation),
        out_shape=jax.ShapeDtypeStruct((M, N), x.dtype),
        grid_spec=pltpu.PrefetchScalarGridSpec(
            num_scalar_prefetch=0,
            grid=(M // tm,),
            in_specs=[
                pl.BlockSpec((tm, K), lambda i: (i, 0)),
                pl.BlockSpec((K, N), lambda i: (0, 0)),
                pl.BlockSpec((1, N), lambda i: (0, 0)),
            ],
            out_specs=pl.BlockSpec((tm, N), lambda i: (i, 0)),
        ),
        compiler_params=pltpu.CompilerParams(dimension_semantics=("parallel",)),
    )(x, w, b.reshape(1, N))


# ============================ LayerNorm (+ fused residual) kernel =======================
def _ln_body(x, g_ref, b_ref, o_ref):
    mean = jnp.mean(x, axis=-1, keepdims=True)
    xc = x - mean
    var = jnp.mean(xc * xc, axis=-1, keepdims=True)
    inv = lax.rsqrt(var + LN_EPS)
    o_ref[...] = (xc * inv * g_ref[...] + b_ref[...]).astype(o_ref.dtype)


def _layernorm_kernel(x_ref, g_ref, b_ref, o_ref):
    _ln_body(x_ref[...].astype(jnp.float32), g_ref, b_ref, o_ref)


def _layernorm_res_kernel(x_ref, r_ref, g_ref, b_ref, o_ref):
    _ln_body(x_ref[...].astype(jnp.float32) + r_ref[...].astype(jnp.float32),
             g_ref, b_ref, o_ref)


def pallas_layernorm(x, gamma, beta, residual=None, tm_max=512):
    M, H = x.shape
    tm = _pick_tile(M, tm_max)
    row_spec = pl.BlockSpec((tm, H), lambda i: (i, 0))
    vec_spec = pl.BlockSpec((1, H), lambda i: (0, 0))
    if residual is None:
        kernel = _layernorm_kernel
        in_specs = [row_spec, vec_spec, vec_spec]
        args = (x, gamma.reshape(1, H), beta.reshape(1, H))
    else:
        kernel = _layernorm_res_kernel
        in_specs = [row_spec, row_spec, vec_spec, vec_spec]
        args = (x, residual, gamma.reshape(1, H), beta.reshape(1, H))
    return pl.pallas_call(
        kernel,
        out_shape=jax.ShapeDtypeStruct((M, H), x.dtype),
        grid_spec=pltpu.PrefetchScalarGridSpec(
            num_scalar_prefetch=0,
            grid=(M // tm,),
            in_specs=in_specs,
            out_specs=row_spec,
        ),
        compiler_params=pltpu.CompilerParams(dimension_semantics=("parallel",)),
    )(*args)


# ====================== fused self-attention kernel (all heads per step) ================
def _attn_kernel(qkv_ref, bias_ref, o_ref, *, num_heads, head_dim, hidden, scale):
    qkv = qkv_ref[0].astype(jnp.float32)            # (S, 3H)
    q = qkv[:, :hidden]
    k = qkv[:, hidden:2 * hidden]
    v = qkv[:, 2 * hidden:]
    bias = bias_ref[0].astype(jnp.float32)          # (1, S) additive mask bias over keys

    ctx = []
    for h in range(num_heads):                      # static unroll over heads
        lo = h * head_dim
        qh = q[:, lo:lo + head_dim].astype(jnp.bfloat16)
        kh = k[:, lo:lo + head_dim].astype(jnp.bfloat16)
        vh = v[:, lo:lo + head_dim].astype(jnp.bfloat16)
        s = lax.dot_general(qh, kh, (((1,), (1,)), ((), ())),
                            preferred_element_type=jnp.float32) * scale
        s = s + bias
        s = s - jnp.max(s, axis=-1, keepdims=True)
        p = jnp.exp(s)
        p = p / jnp.sum(p, axis=-1, keepdims=True)
        ctx.append(jnp.dot(p.astype(jnp.bfloat16), vh,
                           preferred_element_type=jnp.float32))
    o_ref[0] = jnp.concatenate(ctx, axis=-1).astype(o_ref.dtype)   # lane-dense (S, H) store


def pallas_attention(qkv, bias):
    # qkv: [B, S, 3H]; bias: [B, 1, S]
    B, S, H3 = qkv.shape
    H = H3 // 3
    scale = 1.0 / (HEAD_DIM ** 0.5)
    return pl.pallas_call(
        functools.partial(_attn_kernel, num_heads=NUM_HEADS, head_dim=HEAD_DIM,
                          hidden=H, scale=scale),
        out_shape=jax.ShapeDtypeStruct((B, S, H), qkv.dtype),
        grid_spec=pltpu.PrefetchScalarGridSpec(
            num_scalar_prefetch=0,
            grid=(B,),
            in_specs=[
                pl.BlockSpec((1, S, H3), lambda b: (b, 0, 0)),
                pl.BlockSpec((1, 1, S), lambda b: (b, 0, 0)),
            ],
            out_specs=pl.BlockSpec((1, S, H), lambda b: (b, 0, 0)),
        ),
        compiler_params=pltpu.CompilerParams(dimension_semantics=("parallel",)),
    )(qkv, bias)


# =============================== CRF Viterbi decode kernel ==============================
def _crf_decode_kernel(len_ref, emis_ref, trans_ref, start_ref, end_ref,
                       tags_ref, bp_ref, *, S, T):
    NEG = jnp.float32(-1e30)
    b = pl.program_id(0)
    seq_len = len_ref[b]                                 # scalar int32 from SMEM
    trans = trans_ref[...].astype(jnp.float32)           # (T, T)  [from, to]
    lane_s = lax.broadcasted_iota(jnp.int32, (1, S), 1)
    lane_t = lax.broadcasted_iota(jnp.int32, (1, T), 1)
    from_iota = lax.broadcasted_iota(jnp.int32, (T, T), 0)
    eye = from_iota == lax.broadcasted_iota(jnp.int32, (T, T), 1)

    def row_to_col(r):  # (1, T) -> (T, 1) without a transpose (select diag + lane reduce)
        return jnp.max(jnp.where(eye, jnp.broadcast_to(r, (T, T)), NEG),
                       axis=1, keepdims=True)

    def emis_at(i):
        return emis_ref[0, pl.ds(i, 1), :].astype(jnp.float32)   # (1, T)

    # ------- forward Viterbi recurrence -------
    score0 = start_ref[...].astype(jnp.float32) + emis_at(0)     # (1, T)

    def step(i, score):
        mat = row_to_col(score) + trans                  # (T_from, T_to)
        best = jnp.max(mat, axis=0, keepdims=True)       # (1, T)
        idx = jnp.min(jnp.where(mat == best, from_iota, T),
                      axis=0, keepdims=True)             # int32 argmax over 'from'
        bp_ref[pl.ds(i, 1), :] = idx
        next_score = best + emis_at(i)
        return jnp.where(i < seq_len, next_score, score)

    score = lax.fori_loop(1, S, step, score0)
    score = score + end_ref[...].astype(jnp.float32)     # (1, T)

    # ------- backtrack -------
    # NOTE: assumes mask is a contiguous prefix with mask[:, 0] == 1 (torchcrf requirement).
    seq_end = seq_len - 1
    best_val = jnp.max(score)
    last_tag = jnp.min(jnp.where(score == best_val, lane_t, T)).astype(jnp.int32)

    tags0 = jnp.where(lane_s == seq_end, last_tag, 0).astype(jnp.int32)   # (1, S)

    def back(j, carry):
        tag, tags = carry
        pos = seq_end - j
        row_idx = jnp.clip(pos + 1, 1, S - 1)
        bp_row = bp_ref[pl.ds(row_idx, 1), :]            # (1, T) int32
        new_tag = jnp.sum(jnp.where(lane_t == tag, bp_row, 0)).astype(jnp.int32)
        valid = pos >= 0
        tags = jnp.where(jnp.logical_and(lane_s == pos, valid), new_tag, tags)
        tag = jnp.where(valid, new_tag, tag)
        return tag, tags

    _, tags = lax.fori_loop(1, S, back, (last_tag, tags0))
    tags_ref[0] = tags                                   # padded positions stay 0


def pallas_crf_decode(emissions, seq_lens, transitions, start_trans, end_trans):
    B, S, T = emissions.shape
    out = pl.pallas_call(
        functools.partial(_crf_decode_kernel, S=S, T=T),
        out_shape=jax.ShapeDtypeStruct((B, 1, S), jnp.int32),
        grid_spec=pltpu.PrefetchScalarGridSpec(
            num_scalar_prefetch=1,                       # seq_lens -> SMEM
            grid=(B,),
            in_specs=[
                pl.BlockSpec((1, S, T), lambda b, lens: (b, 0, 0)),
                pl.BlockSpec((T, T), lambda b, lens: (0, 0)),
                pl.BlockSpec((1, T), lambda b, lens: (0, 0)),
                pl.BlockSpec((1, T), lambda b, lens: (0, 0)),
            ],
            out_specs=pl.BlockSpec((1, 1, S), lambda b, lens: (b, 0, 0)),
            scratch_shapes=[pltpu.VMEM((S, T), jnp.int32)],
        ),
        compiler_params=pltpu.CompilerParams(dimension_semantics=("parallel",)),
    )(seq_lens, emissions, transitions, start_trans.reshape(1, T), end_trans.reshape(1, T))
    return out.reshape(B, S)


# ================================ model glue (plain JAX) ================================
def bert_crf_forward(params, input_ids, attention_mask, token_type_ids):
    B, S = input_ids.shape

    # embeddings: word + position + token_type, then LayerNorm (dropout = identity)
    emb = (jnp.take(params["word_emb"], input_ids, axis=0)
           + params["pos_emb"][None, :S, :]
           + jnp.take(params["type_emb"], token_type_ids, axis=0))
    x = emb.reshape(B * S, HIDDEN)
    x = pallas_layernorm(x, params["emb_ln_g"], params["emb_ln_b"])

    # additive attention-mask bias over key positions: [B, 1, S]
    bias = ((1.0 - attention_mask.astype(jnp.float32)) * -1e9).reshape(B, 1, S)

    for layer in params["layers"]:
        # fused QKV projection -> per-batch attention over all heads (no HBM transposes)
        qkv = pallas_linear(x, layer["wqkv"], layer["bqkv"])           # (B*S, 3H)
        ctx = pallas_attention(qkv.reshape(B, S, 3 * HIDDEN), bias)    # (B, S, H)
        attn_out = pallas_linear(ctx.reshape(B * S, HIDDEN), layer["wo"], layer["bo"])
        x = pallas_layernorm(attn_out, layer["ln1_g"], layer["ln1_b"], residual=x)

        h = pallas_linear(x, layer["wi"], layer["bi"], activation="gelu")
        ff = pallas_linear(h, layer["wf"], layer["bf"])
        x = pallas_layernorm(ff, layer["ln2_g"], layer["ln2_b"], residual=x)

    # sequence_output -> dropout (identity) -> classifier (lane-padded to 128) -> dropout
    logits_pad = pallas_linear(x, params["cls_w_pad"], params["cls_b_pad"])  # (B*S, 128)
    logits = logits_pad.reshape(B, S, NUM_TAGS_PAD)[:, :, :NUM_TAGS]

    # CRF decode (labels is None path): Viterbi best tag sequence per batch element
    seq_lens = jnp.sum(attention_mask.astype(jnp.int32), axis=-1)
    tags = pallas_crf_decode(logits, seq_lens, params["crf_trans"],
                             params["crf_start"], params["crf_end"])
    return tags


def init_params(key):
    def nrm(k, shape, scale=0.02):
        return (scale * jax.random.normal(k, shape)).astype(jnp.float32)

    keys = iter(jax.random.split(key, 64))
    cls_w = nrm(next(keys), (HIDDEN, NUM_TAGS))
    cls_w_pad = jnp.zeros((HIDDEN, NUM_TAGS_PAD), jnp.float32).at[:, :NUM_TAGS].set(cls_w)
    params = {
        "word_emb": nrm(next(keys), (VOCAB, HIDDEN)),
        "pos_emb": nrm(next(keys), (MAX_POS, HIDDEN)),
        "type_emb": nrm(next(keys), (2, HIDDEN)),
        "emb_ln_g": jnp.ones((HIDDEN,), jnp.float32),
        "emb_ln_b": jnp.zeros((HIDDEN,), jnp.float32),
        "layers": [],
        "cls_w_pad": cls_w_pad,
        "cls_b_pad": jnp.zeros((NUM_TAGS_PAD,), jnp.float32),
        "crf_trans": nrm(next(keys), (NUM_TAGS, NUM_TAGS), scale=0.1),
        "crf_start": nrm(next(keys), (NUM_TAGS,), scale=0.1),
        "crf_end": nrm(next(keys), (NUM_TAGS,), scale=0.1),
    }
    for _ in range(NUM_LAYERS):
        layer = {
            "wqkv": nrm(next(keys), (HIDDEN, 3 * HIDDEN)),
            "bqkv": jnp.zeros((3 * HIDDEN,), jnp.float32),
            "wo": nrm(next(keys), (HIDDEN, HIDDEN)), "bo": jnp.zeros((HIDDEN,), jnp.float32),
            "ln1_g": jnp.ones((HIDDEN,), jnp.float32), "ln1_b": jnp.zeros((HIDDEN,), jnp.float32),
            "wi": nrm(next(keys), (HIDDEN, INTERMEDIATE)), "bi": jnp.zeros((INTERMEDIATE,), jnp.float32),
            "wf": nrm(next(keys), (INTERMEDIATE, HIDDEN)), "bf": jnp.zeros((HIDDEN,), jnp.float32),
            "ln2_g": jnp.ones((HIDDEN,), jnp.float32), "ln2_b": jnp.zeros((HIDDEN,), jnp.float32),
        }
        params["layers"].append(layer)
    return params


if __name__ == "__main__":
    key = jax.random.PRNGKey(0)
    pkey, ikey = jax.random.split(key)
    params = init_params(pkey)

    B, S = 2, 8
    input_ids = jax.random.randint(ikey, (B, S), 0, VOCAB, dtype=jnp.int32)
    attention_mask = jnp.ones((B, S), jnp.int32)
    token_type_ids = jnp.zeros((B, S), jnp.int32)

    tags = bert_crf_forward(params, input_ids, attention_mask, token_type_ids)
    tags = jax.block_until_ready(tags)
    assert tags.shape == (B, S) and tags.dtype == jnp.int32
    print("KERNEL_OK")
</pallas_src>

<mosaic_0001>
module attributes {stable_mosaic.version = 11 : i64} {
  func.func @_layernorm_kernel(%arg0: i32, %arg1: memref<16x768xf32, #tpu.memory_space<vmem>>, %arg2: memref<1x768xf32, #tpu.memory_space<vmem>>, %arg3: memref<1x768xf32, #tpu.memory_space<vmem>>, %arg4: memref<16x768xf32, #tpu.memory_space<vmem>>) attributes {dimension_semantics = [#tpu.dimension_semantics<parallel>], iteration_bounds = array<i64: 1>, scalar_prefetch = 0 : i64, scratch_operands = 0 : i64, tpu.core_type = #tpu.core_type<tc>, window_params = [{transform_indices = @transform_0, window_bounds = array<i64: 16, 768>}, {pipeline_mode = #tpu.pipeline_mode<synchronous>, transform_indices = @transform_1, window_bounds = array<i64: 1, 768>}, {pipeline_mode = #tpu.pipeline_mode<synchronous>, transform_indices = @transform_2, window_bounds = array<i64: 1, 768>}, {transform_indices = @transform_3, window_bounds = array<i64: 16, 768>}]} {
    %c0 = arith.constant 0 : index
    %c0_0 = arith.constant 0 : index
    %0 = vector.load %arg1[%c0, %c0_0] : memref<16x768xf32, #tpu.memory_space<vmem>>, vector<16x768xf32>
    %cst = arith.constant dense<0.000000e+00> : vector<16xf32>
    %1 = vector.multi_reduction <add>, %0, %cst [1] : vector<16x768xf32> to vector<16xf32>
    %2 = vector.shape_cast %1 : vector<16xf32> to vector<16x1xf32>
    %cst_1 = arith.constant 7.680000e+02 : f32
    %3 = vector.broadcast %cst_1 : f32 to vector<16x1xf32>
    %4 = arith.divf %2, %3 : vector<16x1xf32>
    %5 = vector.broadcast %4 : vector<16x1xf32> to vector<16x768xf32>
    %6 = arith.subf %0, %5 : vector<16x768xf32>
    %7 = arith.mulf %6, %6 : vector<16x768xf32>
    %cst_2 = arith.constant dense<0.000000e+00> : vector<16xf32>
    %8 = vector.multi_reduction <add>, %7, %cst_2 [1] : vector<16x768xf32> to vector<16xf32>
    %9 = vector.shape_cast %8 : vector<16xf32> to vector<16x1xf32>
    %cst_3 = arith.constant 7.680000e+02 : f32
    %10 = vector.broadcast %cst_3 : f32 to vector<16x1xf32>
    %11 = arith.divf %9, %10 : vector<16x1xf32>
    %cst_4 = arith.constant 9.99999996E-13 : f32
    %12 = vector.broadcast %cst_4 : f32 to vector<16x1xf32>
    %13 = arith.addf %11, %12 : vector<16x1xf32>
    %14 = math.rsqrt %13 : vector<16x1xf32>
    %15 = vector.broadcast %14 : vector<16x1xf32> to vector<16x768xf32>
    %16 = arith.mulf %6, %15 : vector<16x768xf32>
    %c0_5 = arith.constant 0 : index
    %c0_6 = arith.constant 0 : index
    %17 = vector.load %arg2[%c0_5, %c0_6] : memref<1x768xf32, #tpu.memory_space<vmem>>, vector<1x768xf32>
    %18 = vector.broadcast %17 : vector<1x768xf32> to vector<16x768xf32>
    %19 = arith.mulf %16, %18 : vector<16x768xf32>
    %c0_7 = arith.constant 0 : index
    %c0_8 = arith.constant 0 : index
    %20 = vector.load %arg3[%c0_7, %c0_8] : memref<1x768xf32, #tpu.memory_space<vmem>>, vector<1x768xf32>
    %21 = vector.broadcast %20 : vector<1x768xf32> to vector<16x768xf32>
    %22 = arith.addf %19, %21 : vector<16x768xf32>
    %c0_9 = arith.constant 0 : index
    %c0_10 = arith.constant 0 : index
    %23 = vector.load %arg4[%c0_9, %c0_10] : memref<16x768xf32, #tpu.memory_space<vmem>>, vector<16x768xf32>
    tpu.vector_store %arg4[%c0_9, %c0_10], %22 {strides = array<i32>} : memref<16x768xf32, #tpu.memory_space<vmem>>, vector<16x768xf32>,
    return
  }
  func.func @transform_0(%arg0: i32) -> (i32, i32) {
    %c0_i32 = arith.constant 0 : i32
    %c0_i32_0 = arith.constant 0 : i32
    return %arg0, %c0_i32 : i32, i32
  }
  func.func @transform_1(%arg0: i32) -> (i32, i32) {
    %c0_i32 = arith.constant 0 : i32
    %c0_i32_0 = arith.constant 0 : i32
    %c0_i32_1 = arith.constant 0 : i32
    return %c0_i32, %c0_i32_0 : i32, i32
  }
  func.func @transform_2(%arg0: i32) -> (i32, i32) {
    %c0_i32 = arith.constant 0 : i32
    %c0_i32_0 = arith.constant 0 : i32
    %c0_i32_1 = arith.constant 0 : i32
    return %c0_i32, %c0_i32_0 : i32, i32
  }
  func.func @transform_3(%arg0: i32) -> (i32, i32) {
    %c0_i32 = arith.constant 0 : i32
    %c0_i32_0 = arith.constant 0 : i32
    return %arg0, %c0_i32 : i32, i32
  }
}

</mosaic_0001>

<llo_original>
// kernel: tpu_custom_call.1
$region0: #{tpu_custom_call.1}
  #allocation0 [shape = 'u32[]', space=smem, size = 0x4, offset = 0x4, fixed_abs, tag = 'smem constant byte address 0x4 - core index']
  #allocation1 [shape = 'u32[144,128]{1,0:T(1,128)}', space=vmem, size = 0x12000, scoped, tag = 'internal scratch']
  %s0 = inlined_call_operand.hbm [shape: f32[16,768], index: 0, kind: input, shape index: {}]
  %s1 = inlined_call_operand.hbm [shape: f32[1,768], index: 1, kind: input, shape index: {}]
  %s2 = inlined_call_operand.hbm [shape: f32[1,768], index: 2, kind: input, shape index: {}]
  %s3 = inlined_call_operand.hbm [shape: f32[16,768], index: 3, kind: output, shape index: {}]
  %s4 = sld [smem:[#allocation0]]
  $region34: #{tpu_custom_call.1} parent=0
    _
  %s6 = ssub.s32 1, %s4
  %s7 = scalar_select 0, %s6, %s4
  $region1: #{tpu_custom_call.1} parent=0
    #allocation2 [shape = 'u8[49152]{0}', space=vmem, size = 0xc000, scoped, tag = 'input window, operand 0, single buffered']
    #allocation3 [shape = 's32[1]{0}', space=sflag, size = 0x4, scoped, tag = 'scoped memory for tpu_custom_call.1']
    #allocation4 [shape = 's32[1]{0}', space=sflag, size = 0x4, scoped, tag = 'scoped memory for tpu_custom_call.1']
    #allocation5 [shape = 'u8[3072]{0}', space=vmem, size = 0xc00, scoped, tag = 'input window, operand 1, single buffered']
    #allocation6 [shape = 's32[1]{0}', space=sflag, size = 0x4, scoped, tag = 'scoped memory for tpu_custom_call.1']
    #allocation7 [shape = 'u8[3072]{0}', space=vmem, size = 0xc00, scoped, tag = 'input window, operand 2, single buffered']
    #allocation8 [shape = 'u8[49152]{0}', space=vmem, size = 0xc000, scoped, tag = 'output window, operand 0, single buffered']
    %8 = vsyncpa [#allocation3], 0
    %9 = vsyncpa [#allocation6], 0
    %10 = vsyncpa [#allocation4], 0
    // Predicated region
    $region2: #{tpu_custom_call.1} parent=1 // pred_check
      _
    $region3: #{tpu_custom_call.1} parent=1 // pred_check_branch
      %12 = sbr.rel (0) target = $region5
    $region4: #{tpu_custom_call.1} parent=1 // pred_region
      %s14 = ssub.s32 1536, 1536
      %15 = vsyncadd [#allocation3], %s14
      %s16 = sshll.u32 [#allocation2], 4
      %s17 = int_to_ptr.vmem [resolvable:$true] %s16
      %22 = dma.hbm_to_vmem [thread:$0]  %s0, 1536, %s17, [#allocation3], 768, 768, 48
    $region5: #{tpu_custom_call.1} parent=1 // pred_fallthru
      _
    // Predicated region
    $region6: #{tpu_custom_call.1} parent=1 // pred_check
      _
    $region7: #{tpu_custom_call.1} parent=1 // pred_check_branch
      %24 = sbr.rel (0) target = $region9
    $region8: #{tpu_custom_call.1} parent=1 // pred_region
      %s26 = ssub.s32 96, 96
      %27 = vsyncadd [#allocation6], %s26
      %s29 = sshll.u32 [#allocation5], 4
      %s30 = int_to_ptr.vmem [resolvable:$true] %s29
      %32 = dma.hbm_to_vmem [thread:$0]  %s1, 96, %s30, [#allocation6]
    $region9: #{tpu_custom_call.1} parent=1 // pred_fallthru
      _
    // Predicated region
    $region10: #{tpu_custom_call.1} parent=1 // pred_check
      _
    $region11: #{tpu_custom_call.1} parent=1 // pred_check_branch
      %34 = sbr.rel (0) target = $region13
    $region12: #{tpu_custom_call.1} parent=1 // pred_region
      %s36 = ssub.s32 96, 96
      %37 = vsyncadd [#allocation6], %s36
      %s39 = sshll.u32 [#allocation7], 4
      %s40 = int_to_ptr.vmem [resolvable:$true] %s39
      %42 = dma.hbm_to_vmem [thread:$0]  %s2, 96, %s40, [#allocation6]
    $region13: #{tpu_custom_call.1} parent=1 // pred_fallthru
      _
    // Predicated region
    $region14: #{tpu_custom_call.1} parent=1 // pred_check
      _
    $region15: #{tpu_custom_call.1} parent=1 // pred_check_branch
      %44 = sbr.rel (0) target = $region17
    $region16: #{tpu_custom_call.1} parent=1 // pred_region
      %45 = dma.done [#allocation3], 1536
    $region17: #{tpu_custom_call.1} parent=1 // pred_fallthru
      _
    // Predicated region
    $region18: #{tpu_custom_call.1} parent=1 // pred_check
      _
    $region19: #{tpu_custom_call.1} parent=1 // pred_check_branch
      %47 = sbr.rel (0) target = $region21
    $region20: #{tpu_custom_call.1} parent=1 // pred_region
      %48 = dma.done [#allocation6], 96
    $region21: #{tpu_custom_call.1} parent=1 // pred_fallthru
      _
    // Predicated region
    $region22: #{tpu_custom_call.1} parent=1 // pred_check
      _
    $region23: #{tpu_custom_call.1} parent=1 // pred_check_branch
      %50 = sbr.rel (0) target = $region25
    $region24: #{tpu_custom_call.1} parent=1 // pred_region
      %51 = dma.done [#allocation6], 96
    $region25: #{tpu_custom_call.1} parent=1 // pred_fallthru
      _
    %v52 = vld [vmem:[#allocation2] sm:$0xff]
    %v53 = vld [vmem:[#allocation2 + $0x8] sm:$0xff]
    %v54 = vld [vmem:[#allocation2 + $0x10] sm:$0xff]
    %v55 = vld [vmem:[#allocation2 + $0x18] sm:$0xff]
    %v56 = vld [vmem:[#allocation2 + $0x20] sm:$0xff]
    %v57 = vld [vmem:[#allocation2 + $0x28] sm:$0xff]
    %v58 = vld [vmem:[#allocation2 + $0x30] sm:$0xff]
    %v59 = vld [vmem:[#allocation2 + $0x38] sm:$0xff]
    %v60 = vld [vmem:[#allocation2 + $0x40] sm:$0xff]
    %v61 = vld [vmem:[#allocation2 + $0x48] sm:$0xff]
    %v62 = vld [vmem:[#allocation2 + $0x50] sm:$0xff]
    %v63 = vld [vmem:[#allocation2 + $0x58] sm:$0xff]
    %v64 = vadd.f32 %v52, %v53
    %v65 = vadd.f32 %v64, %v54
    %v66 = vadd.f32 %v65, %v55
    %v67 = vadd.f32 %v66, %v56
    %v68 = vadd.f32 %v67, %v57
    %69 = vadd.xlane.f32.xlu0 %v68
    %v70 = vpop.xlane.xlu0 %69
    %v71 = vadd.f32 %v58, %v59
    %v72 = vadd.f32 %v71, %v60
    %v73 = vadd.f32 %v72, %v61
    %v74 = vadd.f32 %v73, %v62
    %v75 = vadd.f32 %v74, %v63
    %76 = vadd.xlane.f32.xlu0 %v75
    %v77 = vpop.xlane.xlu0 %76
    %v78 = vrcp.pop 768.0
    %v79 = vmul.f32 %v70, %v78
    %v80 = vmul.f32 %v77, %v78
    %v81 = vsub.f32 %v52, %v79
    %v82 = vsub.f32 %v53, %v79
    %v83 = vsub.f32 %v54, %v79
    %v84 = vsub.f32 %v55, %v79
    %v85 = vsub.f32 %v56, %v79
    %v86 = vsub.f32 %v57, %v79
    %v87 = vsub.f32 %v58, %v80
    %v88 = vsub.f32 %v59, %v80
    %v89 = vsub.f32 %v60, %v80
    %v90 = vsub.f32 %v61, %v80
    %v91 = vsub.f32 %v62, %v80
    %v92 = vsub.f32 %v63, %v80
    %v93 = vmul.f32 %v81, %v81
    %v94 = vmul.f32 %v82, %v82
    %v95 = vmul.f32 %v83, %v83
    %v96 = vmul.f32 %v84, %v84
    %v97 = vmul.f32 %v85, %v85
    %v98 = vmul.f32 %v86, %v86
    %v99 = vmul.f32 %v87, %v87
    %v100 = vmul.f32 %v88, %v88
    %v101 = vmul.f32 %v89, %v89
    %v102 = vmul.f32 %v90, %v90
    %v103 = vmul.f32 %v91, %v91
    %v104 = vmul.f32 %v92, %v92
    %v105 = vadd.f32 %v93, %v94
    %v106 = vadd.f32 %v105, %v95
    %v107 = vadd.f32 %v106, %v96
    %v108 = vadd.f32 %v107, %v97
    %v109 = vadd.f32 %v108, %v98
    %110 = vadd.xlane.f32.xlu0 %v109
    %v111 = vpop.xlane.xlu0 %110
    %v112 = vadd.f32 %v99, %v100
    %v113 = vadd.f32 %v112, %v101
    %v114 = vadd.f32 %v113, %v102
    %v115 = vadd.f32 %v114, %v103
    %v116 = vadd.f32 %v115, %v104
    %117 = vadd.xlane.f32.xlu0 %v116
    %v118 = vpop.xlane.xlu0 %117
    %v119 = vmul.f32 %v111, %v78
    %v120 = vmul.f32 %v118, %v78
    %v121 = vadd.f32 %v119, 1e-12
    %v122 = vadd.f32 %v120, 1e-12
    %v123 = vrsqrt.pop %v121
    %v124 = vrsqrt.pop %v122
    %v125 = vmul.f32 %v81, %v123
    %v126 = vmul.f32 %v82, %v123
    %v127 = vmul.f32 %v83, %v123
    %v128 = vmul.f32 %v84, %v123
    %v129 = vmul.f32 %v85, %v123
    %v130 = vmul.f32 %v86, %v123
    %v131 = vmul.f32 %v87, %v124
    %v132 = vmul.f32 %v88, %v124
    %v133 = vmul.f32 %v89, %v124
    %v134 = vmul.f32 %v90, %v124
    %v135 = vmul.f32 %v91, %v124
    %v136 = vmul.f32 %v92, %v124
    %v137 = vld [vmem:[#allocation5] sm:$0x3f]
    %v139 = vlaneseq
    %v140 = vshrl.u32 %v139, 7
    %v141 = vsub.s32 0, %v140
    %v142 = vrot.slane %v137, %v141
    %v143 = vlaneseq
    %v144 = vshrl.u32 %v143, 7
    %v145 = vsub.s32 1, %v144
    %v146 = vrot.slane %v137, %v145
    %v147 = vlaneseq
    %v148 = vshrl.u32 %v147, 7
    %v149 = vsub.s32 2, %v148
    %v150 = vrot.slane %v137, %v149
    %v151 = vlaneseq
    %v152 = vshrl.u32 %v151, 7
    %v153 = vsub.s32 3, %v152
    %v154 = vrot.slane %v137, %v153
    %v155 = vlaneseq
    %v156 = vshrl.u32 %v155, 7
    %v157 = vsub.s32 4, %v156
    %v158 = vrot.slane %v137, %v157
    %v159 = vlaneseq
    %v160 = vshrl.u32 %v159, 7
    %v161 = vsub.s32 5, %v160
    %v162 = vrot.slane %v137, %v161
    %v169 = vmul.f32 %v125, %v142
    %v170 = vmul.f32 %v126, %v146
    %v171 = vmul.f32 %v127, %v150
    %v172 = vmul.f32 %v128, %v154
    %v173 = vmul.f32 %v129, %v158
    %v174 = vmul.f32 %v130, %v162
    %v175 = vmul.f32 %v131, %v142
    %v176 = vmul.f32 %v132, %v146
    %v177 = vmul.f32 %v133, %v150
    %v178 = vmul.f32 %v134, %v154
    %v179 = vmul.f32 %v135, %v158
    %v180 = vmul.f32 %v136, %v162
    %v181 = vld [vmem:[#allocation7] sm:$0x3f]
    %v183 = vlaneseq
    %v184 = vshrl.u32 %v183, 7
    %v185 = vsub.s32 0, %v184
    %v186 = vrot.slane %v181, %v185
    %v187 = vlaneseq
    %v188 = vshrl.u32 %v187, 7
    %v189 = vsub.s32 1, %v188
    %v190 = vrot.slane %v181, %v189
    %v191 = vlaneseq
    %v192 = vshrl.u32 %v191, 7
    %v193 = vsub.s32 2, %v192
    %v194 = vrot.slane %v181, %v193
    %v195 = vlaneseq
    %v196 = vshrl.u32 %v195, 7
    %v197 = vsub.s32 3, %v196
    %v198 = vrot.slane %v181, %v197
    %v199 = vlaneseq
    %v200 = vshrl.u32 %v199, 7
    %v201 = vsub.s32 4, %v200
    %v202 = vrot.slane %v181, %v201
    %v203 = vlaneseq
    %v204 = vshrl.u32 %v203, 7
    %v205 = vsub.s32 5, %v204
    %v206 = vrot.slane %v181, %v205
    %v213 = vadd.f32 %v169, %v186
    %v214 = vadd.f32 %v170, %v190
    %v215 = vadd.f32 %v171, %v194
    %v216 = vadd.f32 %v172, %v198
    %v217 = vadd.f32 %v173, %v202
    %v218 = vadd.f32 %v174, %v206
    %v219 = vadd.f32 %v175, %v186
    %v220 = vadd.f32 %v176, %v190
    %v221 = vadd.f32 %v177, %v194
    %v222 = vadd.f32 %v178, %v198
    %v223 = vadd.f32 %v179, %v202
    %v224 = vadd.f32 %v180, %v206
    %225 = vst [vmem:[#allocation8] sm:$0xff] %v213
    %226 = vst [vmem:[#allocation8 + $0x8] sm:$0xff] %v214
    %227 = vst [vmem:[#allocation8 + $0x10] sm:$0xff] %v215
    %228 = vst [vmem:[#allocation8 + $0x18] sm:$0xff] %v216
    %229 = vst [vmem:[#allocation8 + $0x20] sm:$0xff] %v217
    %230 = vst [vmem:[#allocation8 + $0x28] sm:$0xff] %v218
    %231 = vst [vmem:[#allocation8 + $0x30] sm:$0xff] %v219
    %232 = vst [vmem:[#allocation8 + $0x38] sm:$0xff] %v220
    %233 = vst [vmem:[#allocation8 + $0x40] sm:$0xff] %v221
    %234 = vst [vmem:[#allocation8 + $0x48] sm:$0xff] %v222
    %235 = vst [vmem:[#allocation8 + $0x50] sm:$0xff] %v223
    %236 = vst [vmem:[#allocation8 + $0x58] sm:$0xff] %v224
    // Predicated region
    $region26: #{tpu_custom_call.1} parent=1 // pred_check
      _
    $region27: #{tpu_custom_call.1} parent=1 // pred_check_branch
      %238 = sbr.rel (0) target = $region29
    $region28: #{tpu_custom_call.1} parent=1 // pred_region
      %s240 = ssub.s32 1536, 1536
      %241 = vsyncadd [#allocation4], %s240
      %s242 = sshll.u32 [#allocation8], 4
      %s243 = int_to_ptr.vmem [resolvable:$true] %s242
      %248 = dma.vmem_to_hbm [thread:$0]  %s243, 1536, %s3, [#allocation4], 768, 768, 48
    $region29: #{tpu_custom_call.1} parent=1 // pred_fallthru
      _
    // Predicated region
    $region30: #{tpu_custom_call.1} parent=1 // pred_check
      _
    $region31: #{tpu_custom_call.1} parent=1 // pred_check_branch
      %250 = sbr.rel (0) target = $region33
    $region32: #{tpu_custom_call.1} parent=1 // pred_region
      %251 = dma.done [#allocation4], 1536
    $region33: #{tpu_custom_call.1} parent=1 // pred_fallthru
      _
    %252 = vsyncpa [#allocation3], 1
    %253 = vsyncpa [#allocation6], 1
    %254 = vsyncpa [#allocation4], 1

</llo_original>
